<compile_context>
chip_gen: v7x
topology: tpu7x:2x2x1
jax: 0.10.0
libtpu: 0.0.40
codegen_flags: <defaults>
</compile_context>

<pallas_src>
import math
from functools import partial

import jax
import jax.numpy as jnp
from jax.experimental import pallas as pl
from jax.experimental.pallas import tpu as pltpu


def _round_up(x, m):
    return ((x + m - 1) // m) * m


_SQRT_2_OVER_PI = math.sqrt(2.0 / math.pi)


def _gelu_tanh(x):
    # tanh-formulated GELU: transcendental goes to the EUP slot (VALU relief).
    return 0.5 * x * (1.0 + jnp.tanh(_SQRT_2_OVER_PI * (x + 0.044715 * x * x * x)))


def _gelu_exact(x):
    # PyTorch nn.GELU() default: exact erf formulation (VALU polynomial on TPU).
    return 0.5 * x * (1.0 + jax.lax.erf(x * (1.0 / math.sqrt(2.0))))


def _affine_vpu(wt, b, x):
    """Feature-major affine layer on the VPU.

    wt: [K_out, K_in] weights, b: [K_out, 1] bias, x: [K_in, T] activations.
    Returns [K_out, T].  K_in is tiny (1 / 4 / 8), so the contraction is a
    trace-time-unrolled sequence of broadcast multiply-adds (outer products):
    each weight-column / activation-row broadcast appears exactly once -- no
    MXU, no contraction-dim padding, no result-FIFO drain.
    """
    k_in = wt.shape[1]
    acc = b + wt[:, 0:1] * x[0:1, :]
    for k in range(1, k_in):
        acc = acc + wt[:, k:k + 1] * x[k:k + 1, :]
    return acc


def _mlp_kernel(x_ref, w1_ref, b1_ref, w2_ref, b2_ref, w3_ref, b3_ref, o_ref, *, gelu):
    x = x_ref[...].astype(jnp.float32)                                   # [C,   T]
    w1 = w1_ref[...].astype(jnp.float32); b1 = b1_ref[...].astype(jnp.float32)
    w2 = w2_ref[...].astype(jnp.float32); b2 = b2_ref[...].astype(jnp.float32)
    w3 = w3_ref[...].astype(jnp.float32); b3 = b3_ref[...].astype(jnp.float32)
    h = gelu(_affine_vpu(w1, b1, x))                                     # [E/4, T]
    h = gelu(_affine_vpu(w2, b2, h))                                     # [E/2, T]
    h = gelu(_affine_vpu(w3, b3, h))                                     # [E,   T]
    o_ref[...] = h.astype(o_ref.dtype)                                   # lane-dense store


def _full_spec(a):
    return pl.BlockSpec(a.shape, lambda i: (0,) * a.ndim)


def mlp_pallas(x_cm, params, *, max_tile_n=32768, gelu="tanh", out_dtype=None):
    """x_cm: [C, N] feature-major tokens -> [E, N] feature-major embeddings."""
    C, N = x_cm.shape
    w1t, b1, w2t, b2, w3t, b3 = params
    E = w3t.shape[0]
    if out_dtype is None:
        out_dtype = x_cm.dtype

    # Lane-dense token tiling: tile is a 128-multiple; cap at ceil(N/2) so the
    # grid has >= 2 steps (v7x megacore sharding + DMA/compute pipelining),
    # while large max_tile_n amortizes the ~0.35 us per-step overhead.
    tile_n = min(max_tile_n, _round_up(pl.cdiv(N, 2), 128))
    grid_n = pl.cdiv(N, tile_n)   # ragged tail handled by Pallas masked boundary block

    gelu_fn = _gelu_tanh if gelu == "tanh" else _gelu_exact
    kernel = partial(_mlp_kernel, gelu=gelu_fn)

    out = pl.pallas_call(
        kernel,
        out_shape=jax.ShapeDtypeStruct((E, N), out_dtype),
        grid_spec=pltpu.PrefetchScalarGridSpec(
            num_scalar_prefetch=0,
            grid=(grid_n,),
            in_specs=[
                pl.BlockSpec((C, tile_n), lambda i: (0, i)),
                _full_spec(w1t), _full_spec(b1),
                _full_spec(w2t), _full_spec(b2),
                _full_spec(w3t), _full_spec(b3),
            ],
            out_specs=pl.BlockSpec((E, tile_n), lambda i: (0, i)),
        ),
        compiler_params=pltpu.CompilerParams(
            dimension_semantics=("parallel",)),
    )(x_cm, w1t, b1, w2t, b2, w3t, b3)
    return out


def init_range_embed_params(key, in_chans=1, embed_dim=16, dtype=jnp.float32):
    """nn.Linear-style init; weights stored feature-major [out, in] (same layout
    as torch nn.Linear.weight), biases as [out, 1] columns."""
    dims = [in_chans, embed_dim // 4, embed_dim // 2, embed_dim]
    params = []
    for idx in range(3):
        fan_in, fan_out = dims[idx], dims[idx + 1]
        key, kw, kb = jax.random.split(key, 3)
        bound = 1.0 / math.sqrt(fan_in)
        w = jax.random.uniform(kw, (fan_out, fan_in), dtype, -bound, bound)
        b = jax.random.uniform(kb, (fan_out, 1), dtype, -bound, bound)
        params += [w, b]
    return tuple(params)


@partial(jax.jit, static_argnames=("embed_dim", "gelu"))
def _range_embed_out(x, params, *, embed_dim, gelu):
    B, C, H, W = x.shape
    N = H * W
    # torch: x = x.view(B, H*W, C)   (raw reshape of NCHW-contiguous storage)
    if C == 1:
        x_cm = x.reshape(1, B * N)          # free raw reshape -> feature-major [C, B*N]
    else:
        # TODO(synk): for in_chans > 1, feed token-major [tile_n, C] blocks and
        # reorient in-kernel instead of paying this [B*N, C] -> [C, B*N] HBM transpose.
        x_cm = x.reshape(B * N, C).T
    y_fm = mlp_pallas(x_cm, params, gelu=gelu)              # [E, B*N]
    # torch-parity glue: back to [B, H*W, E], then view(B, E, H, W) scramble and
    # flatten(2).transpose(1, 2).  Under jit XLA fuses this transpose/reshape
    # chain into a single copy of the small [B*N, E] result; the view-scramble
    # itself cannot be folded into the kernel's lane-dense output layout.
    y = y_fm.T.reshape(B, N, embed_dim)
    out = jnp.transpose(y.reshape(B, embed_dim, N), (0, 2, 1))
    return out


def range_embed_forward(x, params, *, embed_dim=16, gelu="tanh"):
    """Reproduces RangeEmbed.forward for proj_type='mlp', norm_layer=None, drop=0.
    gelu='tanh' routes the transcendental to the EUP (fast); gelu='exact' keeps
    bit-level parity with torch nn.GELU()'s erf formulation."""
    _, _, H, W = x.shape
    out = _range_embed_out(x, params, embed_dim=embed_dim, gelu=gelu)
    return H, W, out   # Ph, Pw == H, W in the 'mlp' branch


def _reference_forward(x, params, *, embed_dim=16, gelu_fn=_gelu_exact):
    """Pure-JAX replica of the torch forward, for correctness checking."""
    B, C, H, W = x.shape
    N = H * W
    w1t, b1, w2t, b2, w3t, b3 = params
    t = x.reshape(B, N, C).astype(jnp.float32)
    h = gelu_fn(t @ w1t.T + b1[:, 0])
    h = gelu_fn(h @ w2t.T + b2[:, 0])
    h = gelu_fn(h @ w3t.T + b3[:, 0])
    out = jnp.transpose(h.reshape(B, embed_dim, N), (0, 2, 1))
    return H, W, out


if __name__ == "__main__":
    # Module defaults: in_chans=1, embed_dim=16, proj_type='mlp'; small spatial size.
    B, C, H, W = 2, 1, 16, 16
    embed_dim = 16

    key = jax.random.PRNGKey(0)
    kx, kp = jax.random.split(key)
    x = jax.random.normal(kx, (B, C, H, W), jnp.float32)
    params = init_range_embed_params(kp, in_chans=C, embed_dim=embed_dim)

    Ph, Pw, out = range_embed_forward(x, params, embed_dim=embed_dim)
    out = jax.block_until_ready(out)

    assert (Ph, Pw) == (H, W)
    assert out.shape == (B, H * W, embed_dim)

    # Tight check: kernel vs pure-JAX replica using the same tanh GELU.
    _, _, ref_tanh = _reference_forward(x, params, embed_dim=embed_dim, gelu_fn=_gelu_tanh)
    assert jnp.allclose(out, ref_tanh, rtol=1e-4, atol=1e-5), "mismatch vs tanh-GELU reference"

    # Parity check vs torch's exact-erf nn.GELU() (loose tolerance: tanh approx).
    _, _, ref_erf = _reference_forward(x, params, embed_dim=embed_dim, gelu_fn=_gelu_exact)
    assert jnp.allclose(out, ref_erf, rtol=5e-3, atol=5e-3), "mismatch vs exact-erf reference"

    print("KERNEL_OK")
</pallas_src>

<mosaic_0001>
module attributes {stable_mosaic.version = 11 : i64} {
  func.func @_mlp_kernel(%arg0: i32, %arg1: memref<1x256xf32, #tpu.memory_space<vmem>>, %arg2: memref<4x1xf32, #tpu.memory_space<vmem>>, %arg3: memref<4x1xf32, #tpu.memory_space<vmem>>, %arg4: memref<8x4xf32, #tpu.memory_space<vmem>>, %arg5: memref<8x1xf32, #tpu.memory_space<vmem>>, %arg6: memref<16x8xf32, #tpu.memory_space<vmem>>, %arg7: memref<16x1xf32, #tpu.memory_space<vmem>>, %arg8: memref<16x256xf32, #tpu.memory_space<vmem>>) attributes {dimension_semantics = [#tpu.dimension_semantics<parallel>], iteration_bounds = array<i64: 2>, scalar_prefetch = 0 : i64, scratch_operands = 0 : i64, tpu.core_type = #tpu.core_type<tc>, window_params = [{transform_indices = @transform_0, window_bounds = array<i64: 1, 256>}, {pipeline_mode = #tpu.pipeline_mode<synchronous>, transform_indices = @transform_1, window_bounds = array<i64: 4, 1>}, {pipeline_mode = #tpu.pipeline_mode<synchronous>, transform_indices = @transform_2, window_bounds = array<i64: 4, 1>}, {pipeline_mode = #tpu.pipeline_mode<synchronous>, transform_indices = @transform_3, window_bounds = array<i64: 8, 4>}, {pipeline_mode = #tpu.pipeline_mode<synchronous>, transform_indices = @transform_4, window_bounds = array<i64: 8, 1>}, {pipeline_mode = #tpu.pipeline_mode<synchronous>, transform_indices = @transform_5, window_bounds = array<i64: 16, 8>}, {pipeline_mode = #tpu.pipeline_mode<synchronous>, transform_indices = @transform_6, window_bounds = array<i64: 16, 1>}, {transform_indices = @transform_7, window_bounds = array<i64: 16, 256>}]} {
    %c0 = arith.constant 0 : index
    %c0_0 = arith.constant 0 : index
    %0 = vector.load %arg1[%c0, %c0_0] : memref<1x256xf32, #tpu.memory_space<vmem>>, vector<1x256xf32>
    %c0_1 = arith.constant 0 : index
    %c0_2 = arith.constant 0 : index
    %1 = vector.load %arg2[%c0_1, %c0_2] : memref<4x1xf32, #tpu.memory_space<vmem>>, vector<4x1xf32>
    %c0_3 = arith.constant 0 : index
    %c0_4 = arith.constant 0 : index
    %2 = vector.load %arg3[%c0_3, %c0_4] : memref<4x1xf32, #tpu.memory_space<vmem>>, vector<4x1xf32>
    %c0_5 = arith.constant 0 : index
    %c0_6 = arith.constant 0 : index
    %3 = vector.load %arg4[%c0_5, %c0_6] : memref<8x4xf32, #tpu.memory_space<vmem>>, vector<8x4xf32>
    %c0_7 = arith.constant 0 : index
    %c0_8 = arith.constant 0 : index
    %4 = vector.load %arg5[%c0_7, %c0_8] : memref<8x1xf32, #tpu.memory_space<vmem>>, vector<8x1xf32>
    %c0_9 = arith.constant 0 : index
    %c0_10 = arith.constant 0 : index
    %5 = vector.load %arg6[%c0_9, %c0_10] : memref<16x8xf32, #tpu.memory_space<vmem>>, vector<16x8xf32>
    %c0_11 = arith.constant 0 : index
    %c0_12 = arith.constant 0 : index
    %6 = vector.load %arg7[%c0_11, %c0_12] : memref<16x1xf32, #tpu.memory_space<vmem>>, vector<16x1xf32>
    %7 = vector.broadcast %1 : vector<4x1xf32> to vector<4x256xf32>
    %8 = vector.broadcast %0 : vector<1x256xf32> to vector<4x256xf32>
    %9 = arith.mulf %7, %8 : vector<4x256xf32>
    %10 = vector.broadcast %2 : vector<4x1xf32> to vector<4x256xf32>
    %11 = arith.addf %10, %9 : vector<4x256xf32>
    %cst = arith.constant 5.000000e-01 : f32
    %12 = vector.broadcast %cst : f32 to vector<4x256xf32>
    %13 = arith.mulf %12, %11 : vector<4x256xf32>
    %cst_13 = arith.constant 4.471500e-02 : f32
    %14 = vector.broadcast %cst_13 : f32 to vector<4x256xf32>
    %15 = arith.mulf %14, %11 : vector<4x256xf32>
    %16 = arith.mulf %15, %11 : vector<4x256xf32>
    %17 = arith.mulf %16, %11 : vector<4x256xf32>
    %18 = arith.addf %11, %17 : vector<4x256xf32>
    %cst_14 = arith.constant 0.797884583 : f32
    %19 = vector.broadcast %cst_14 : f32 to vector<4x256xf32>
    %20 = arith.mulf %19, %18 : vector<4x256xf32>
    %21 = math.tanh %20 : vector<4x256xf32>
    %cst_15 = arith.constant 1.000000e+00 : f32
    %22 = vector.broadcast %cst_15 : f32 to vector<4x256xf32>
    %23 = arith.addf %22, %21 : vector<4x256xf32>
    %24 = arith.mulf %13, %23 : vector<4x256xf32>
    %25 = vector.extract_strided_slice %3 {offsets = [0, 0], sizes = [8, 1], strides = [1, 1]} : vector<8x4xf32> to vector<8x1xf32>
    %26 = vector.extract_strided_slice %24 {offsets = [0, 0], sizes = [1, 256], strides = [1, 1]} : vector<4x256xf32> to vector<1x256xf32>
    %27 = vector.broadcast %25 : vector<8x1xf32> to vector<8x256xf32>
    %28 = vector.broadcast %26 : vector<1x256xf32> to vector<8x256xf32>
    %29 = arith.mulf %27, %28 : vector<8x256xf32>
    %30 = vector.broadcast %4 : vector<8x1xf32> to vector<8x256xf32>
    %31 = arith.addf %30, %29 : vector<8x256xf32>
    %32 = vector.extract_strided_slice %3 {offsets = [0, 1], sizes = [8, 1], strides = [1, 1]} : vector<8x4xf32> to vector<8x1xf32>
    %33 = vector.extract_strided_slice %24 {offsets = [1, 0], sizes = [1, 256], strides = [1, 1]} : vector<4x256xf32> to vector<1x256xf32>
    %34 = vector.broadcast %32 : vector<8x1xf32> to vector<8x256xf32>
    %35 = vector.broadcast %33 : vector<1x256xf32> to vector<8x256xf32>
    %36 = arith.mulf %34, %35 : vector<8x256xf32>
    %37 = arith.addf %31, %36 : vector<8x256xf32>
    %38 = vector.extract_strided_slice %3 {offsets = [0, 2], sizes = [8, 1], strides = [1, 1]} : vector<8x4xf32> to vector<8x1xf32>
    %39 = vector.extract_strided_slice %24 {offsets = [2, 0], sizes = [1, 256], strides = [1, 1]} : vector<4x256xf32> to vector<1x256xf32>
    %40 = vector.broadcast %38 : vector<8x1xf32> to vector<8x256xf32>
    %41 = vector.broadcast %39 : vector<1x256xf32> to vector<8x256xf32>
    %42 = arith.mulf %40, %41 : vector<8x256xf32>
    %43 = arith.addf %37, %42 : vector<8x256xf32>
    %44 = vector.extract_strided_slice %3 {offsets = [0, 3], sizes = [8, 1], strides = [1, 1]} : vector<8x4xf32> to vector<8x1xf32>
    %45 = vector.extract_strided_slice %24 {offsets = [3, 0], sizes = [1, 256], strides = [1, 1]} : vector<4x256xf32> to vector<1x256xf32>
    %46 = vector.broadcast %44 : vector<8x1xf32> to vector<8x256xf32>
    %47 = vector.broadcast %45 : vector<1x256xf32> to vector<8x256xf32>
    %48 = arith.mulf %46, %47 : vector<8x256xf32>
    %49 = arith.addf %43, %48 : vector<8x256xf32>
    %cst_16 = arith.constant 5.000000e-01 : f32
    %50 = vector.broadcast %cst_16 : f32 to vector<8x256xf32>
    %51 = arith.mulf %50, %49 : vector<8x256xf32>
    %cst_17 = arith.constant 4.471500e-02 : f32
    %52 = vector.broadcast %cst_17 : f32 to vector<8x256xf32>
    %53 = arith.mulf %52, %49 : vector<8x256xf32>
    %54 = arith.mulf %53, %49 : vector<8x256xf32>
    %55 = arith.mulf %54, %49 : vector<8x256xf32>
    %56 = arith.addf %49, %55 : vector<8x256xf32>
    %cst_18 = arith.constant 0.797884583 : f32
    %57 = vector.broadcast %cst_18 : f32 to vector<8x256xf32>
    %58 = arith.mulf %57, %56 : vector<8x256xf32>
    %59 = math.tanh %58 : vector<8x256xf32>
    %cst_19 = arith.constant 1.000000e+00 : f32
    %60 = vector.broadcast %cst_19 : f32 to vector<8x256xf32>
    %61 = arith.addf %60, %59 : vector<8x256xf32>
    %62 = arith.mulf %51, %61 : vector<8x256xf32>
    %63 = vector.extract_strided_slice %5 {offsets = [0, 0], sizes = [16, 1], strides = [1, 1]} : vector<16x8xf32> to vector<16x1xf32>
    %64 = vector.extract_strided_slice %62 {offsets = [0, 0], sizes = [1, 256], strides = [1, 1]} : vector<8x256xf32> to vector<1x256xf32>
    %65 = vector.broadcast %63 : vector<16x1xf32> to vector<16x256xf32>
    %66 = vector.broadcast %64 : vector<1x256xf32> to vector<16x256xf32>
    %67 = arith.mulf %65, %66 : vector<16x256xf32>
    %68 = vector.broadcast %6 : vector<16x1xf32> to vector<16x256xf32>
    %69 = arith.addf %68, %67 : vector<16x256xf32>
    %70 = vector.extract_strided_slice %5 {offsets = [0, 1], sizes = [16, 1], strides = [1, 1]} : vector<16x8xf32> to vector<16x1xf32>
    %71 = vector.extract_strided_slice %62 {offsets = [1, 0], sizes = [1, 256], strides = [1, 1]} : vector<8x256xf32> to vector<1x256xf32>
    %72 = vector.broadcast %70 : vector<16x1xf32> to vector<16x256xf32>
    %73 = vector.broadcast %71 : vector<1x256xf32> to vector<16x256xf32>
    %74 = arith.mulf %72, %73 : vector<16x256xf32>
    %75 = arith.addf %69, %74 : vector<16x256xf32>
    %76 = vector.extract_strided_slice %5 {offsets = [0, 2], sizes = [16, 1], strides = [1, 1]} : vector<16x8xf32> to vector<16x1xf32>
    %77 = vector.extract_strided_slice %62 {offsets = [2, 0], sizes = [1, 256], strides = [1, 1]} : vector<8x256xf32> to vector<1x256xf32>
    %78 = vector.broadcast %76 : vector<16x1xf32> to vector<16x256xf32>
    %79 = vector.broadcast %77 : vector<1x256xf32> to vector<16x256xf32>
    %80 = arith.mulf %78, %79 : vector<16x256xf32>
    %81 = arith.addf %75, %80 : vector<16x256xf32>
    %82 = vector.extract_strided_slice %5 {offsets = [0, 3], sizes = [16, 1], strides = [1, 1]} : vector<16x8xf32> to vector<16x1xf32>
    %83 = vector.extract_strided_slice %62 {offsets = [3, 0], sizes = [1, 256], strides = [1, 1]} : vector<8x256xf32> to vector<1x256xf32>
    %84 = vector.broadcast %82 : vector<16x1xf32> to vector<16x256xf32>
    %85 = vector.broadcast %83 : vector<1x256xf32> to vector<16x256xf32>
    %86 = arith.mulf %84, %85 : vector<16x256xf32>
    %87 = arith.addf %81, %86 : vector<16x256xf32>
    %88 = vector.extract_strided_slice %5 {offsets = [0, 4], sizes = [16, 1], strides = [1, 1]} : vector<16x8xf32> to vector<16x1xf32>
    %89 = vector.extract_strided_slice %62 {offsets = [4, 0], sizes = [1, 256], strides = [1, 1]} : vector<8x256xf32> to vector<1x256xf32>
    %90 = vector.broadcast %88 : vector<16x1xf32> to vector<16x256xf32>
    %91 = vector.broadcast %89 : vector<1x256xf32> to vector<16x256xf32>
    %92 = arith.mulf %90, %91 : vector<16x256xf32>
    %93 = arith.addf %87, %92 : vector<16x256xf32>
    %94 = vector.extract_strided_slice %5 {offsets = [0, 5], sizes = [16, 1], strides = [1, 1]} : vector<16x8xf32> to vector<16x1xf32>
    %95 = vector.extract_strided_slice %62 {offsets = [5, 0], sizes = [1, 256], strides = [1, 1]} : vector<8x256xf32> to vector<1x256xf32>
    %96 = vector.broadcast %94 : vector<16x1xf32> to vector<16x256xf32>
    %97 = vector.broadcast %95 : vector<1x256xf32> to vector<16x256xf32>
    %98 = arith.mulf %96, %97 : vector<16x256xf32>
    %99 = arith.addf %93, %98 : vector<16x256xf32>
    %100 = vector.extract_strided_slice %5 {offsets = [0, 6], sizes = [16, 1], strides = [1, 1]} : vector<16x8xf32> to vector<16x1xf32>
    %101 = vector.extract_strided_slice %62 {offsets = [6, 0], sizes = [1, 256], strides = [1, 1]} : vector<8x256xf32> to vector<1x256xf32>
    %102 = vector.broadcast %100 : vector<16x1xf32> to vector<16x256xf32>
    %103 = vector.broadcast %101 : vector<1x256xf32> to vector<16x256xf32>
    %104 = arith.mulf %102, %103 : vector<16x256xf32>
    %105 = arith.addf %99, %104 : vector<16x256xf32>
    %106 = vector.extract_strided_slice %5 {offsets = [0, 7], sizes = [16, 1], strides = [1, 1]} : vector<16x8xf32> to vector<16x1xf32>
    %107 = vector.extract_strided_slice %62 {offsets = [7, 0], sizes = [1, 256], strides = [1, 1]} : vector<8x256xf32> to vector<1x256xf32>
    %108 = vector.broadcast %106 : vector<16x1xf32> to vector<16x256xf32>
    %109 = vector.broadcast %107 : vector<1x256xf32> to vector<16x256xf32>
    %110 = arith.mulf %108, %109 : vector<16x256xf32>
    %111 = arith.addf %105, %110 : vector<16x256xf32>
    %cst_20 = arith.constant 5.000000e-01 : f32
    %112 = vector.broadcast %cst_20 : f32 to vector<16x256xf32>
    %113 = arith.mulf %112, %111 : vector<16x256xf32>
    %cst_21 = arith.constant 4.471500e-02 : f32
    %114 = vector.broadcast %cst_21 : f32 to vector<16x256xf32>
    %115 = arith.mulf %114, %111 : vector<16x256xf32>
    %116 = arith.mulf %115, %111 : vector<16x256xf32>
    %117 = arith.mulf %116, %111 : vector<16x256xf32>
    %118 = arith.addf %111, %117 : vector<16x256xf32>
    %cst_22 = arith.constant 0.797884583 : f32
    %119 = vector.broadcast %cst_22 : f32 to vector<16x256xf32>
    %120 = arith.mulf %119, %118 : vector<16x256xf32>
    %121 = math.tanh %120 : vector<16x256xf32>
    %cst_23 = arith.constant 1.000000e+00 : f32
    %122 = vector.broadcast %cst_23 : f32 to vector<16x256xf32>
    %123 = arith.addf %122, %121 : vector<16x256xf32>
    %124 = arith.mulf %113, %123 : vector<16x256xf32>
    %c0_24 = arith.constant 0 : index
    %c0_25 = arith.constant 0 : index
    %125 = vector.load %arg8[%c0_24, %c0_25] : memref<16x256xf32, #tpu.memory_space<vmem>>, vector<16x256xf32>
    tpu.vector_store %arg8[%c0_24, %c0_25], %124 {strides = array<i32>} : memref<16x256xf32, #tpu.memory_space<vmem>>, vector<16x256xf32>,
    return
  }
  func.func @transform_0(%arg0: i32) -> (i32, i32) {
    %c0_i32 = arith.constant 0 : i32
    %c0_i32_0 = arith.constant 0 : i32
    return %c0_i32, %arg0 : i32, i32
  }
  func.func @transform_1(%arg0: i32) -> (i32, i32) {
    %c0_i32 = arith.constant 0 : i32
    %c0_i32_0 = arith.constant 0 : i32
    %c0_i32_1 = arith.constant 0 : i32
    return %c0_i32, %c0_i32_0 : i32, i32
  }
  func.func @transform_2(%arg0: i32) -> (i32, i32) {
    %c0_i32 = arith.constant 0 : i32
    %c0_i32_0 = arith.constant 0 : i32
    %c0_i32_1 = arith.constant 0 : i32
    return %c0_i32, %c0_i32_0 : i32, i32
  }
  func.func @transform_3(%arg0: i32) -> (i32, i32) {
    %c0_i32 = arith.constant 0 : i32
    %c0_i32_0 = arith.constant 0 : i32
    %c0_i32_1 = arith.constant 0 : i32
    return %c0_i32, %c0_i32_0 : i32, i32
  }
  func.func @transform_4(%arg0: i32) -> (i32, i32) {
    %c0_i32 = arith.constant 0 : i32
    %c0_i32_0 = arith.constant 0 : i32
    %c0_i32_1 = arith.constant 0 : i32
    return %c0_i32, %c0_i32_0 : i32, i32
  }
  func.func @transform_5(%arg0: i32) -> (i32, i32) {
    %c0_i32 = arith.constant 0 : i32
    %c0_i32_0 = arith.constant 0 : i32
    %c0_i32_1 = arith.constant 0 : i32
    return %c0_i32, %c0_i32_0 : i32, i32
  }
  func.func @transform_6(%arg0: i32) -> (i32, i32) {
    %c0_i32 = arith.constant 0 : i32
    %c0_i32_0 = arith.constant 0 : i32
    %c0_i32_1 = arith.constant 0 : i32
    return %c0_i32, %c0_i32_0 : i32, i32
  }
  func.func @transform_7(%arg0: i32) -> (i32, i32) {
    %c0_i32 = arith.constant 0 : i32
    %c0_i32_0 = arith.constant 0 : i32
    return %c0_i32, %arg0 : i32, i32
  }
}

</mosaic_0001>

<llo_original>
// kernel: _range_embed_out.1
$region0: #{_range_embed_out.1}
  #allocation0 [shape = 'u32[]', space=smem, size = 0x4, offset = 0x4, fixed_abs, tag = 'smem constant byte address 0x4 - core index']
  #allocation1 [shape = 'u32[144,128]{1,0:T(1,128)}', space=vmem, size = 0x12000, scoped, tag = 'internal scratch']
  %s0 = inlined_call_operand.vmem [shape: f32[1,512], index: 0, kind: input, shape index: {}]
  %s1 = inlined_call_operand.vmem [shape: f32[4,1], index: 1, kind: input, shape index: {}]
  %s2 = inlined_call_operand.vmem [shape: f32[4,1], index: 2, kind: input, shape index: {}]
  %s3 = inlined_call_operand.vmem [shape: f32[8,4], index: 3, kind: input, shape index: {}]
  %s4 = inlined_call_operand.vmem [shape: f32[8,1], index: 4, kind: input, shape index: {}]
  %s5 = inlined_call_operand.vmem [shape: f32[16,8], index: 5, kind: input, shape index: {}]
  %s6 = inlined_call_operand.vmem [shape: f32[16,1], index: 6, kind: input, shape index: {}]
  %s7 = inlined_call_operand.vmem [shape: f32[16,512], index: 7, kind: output, shape index: {}]
  %s8 = sld [smem:[#allocation0]]
  $region80: #{_range_embed_out.1} parent=0
    _
  %s10 = ssub.s32 1, %s8
  %s11 = scalar_select 0, %s10, %s8
  $region1: #{_range_embed_out.1} parent=0
    #allocation2 [shape = 'u8[32768]{0}', space=vmem, size = 0x8000, scoped, tag = 'output window, operand 0']
    loop: start=0, step=1, limit=4
    $region2: #{_range_embed_out.1} parent=1 // loop_pre_header
      _
    $region3: #{_range_embed_out.1} parent=1 // loop_header
      %s13 = sphi 0, %s17
      %p14 = scmp.ge.s32.totalorder %s13, 4
      %s23 = sphi 0, %s25
      %s26 = sphi 0, %s23
      %s27 = sphi 0, %s26
      %s43 = sphi 0, %s27
      %s47 = sphi 0, %s47
      %s49 = sphi 0, %s47
      %s50 = sphi 0, %s49
      %s64 = sphi 0, %s50
      %s68 = sphi 0, %s68
      %s70 = sphi 0, %s68
      %s71 = sphi 0, %s70
      %s85 = sphi 0, %s71
      %s89 = sphi 0, %s89
      %s91 = sphi 0, %s89
      %s92 = sphi 0, %s91
      %s106 = sphi 0, %s92
      %s110 = sphi 0, %s110
      %s112 = sphi 0, %s110
      %s113 = sphi 0, %s112
      %s127 = sphi 0, %s113
      %s131 = sphi 0, %s131
      %s133 = sphi 0, %s131
      %s134 = sphi 0, %s133
      %s148 = sphi 0, %s134
      %s152 = sphi 0, %s152
      %s154 = sphi 0, %s152
      %s155 = sphi 0, %s154
      %s169 = sphi 0, %s155
      %s175 = sphi 0, %s177
      %s178 = sphi 0, %s175
      %s179 = sphi 0, %s178
      %s195 = sphi 0, %s179
    $region4: #{_range_embed_out.1} parent=1 // loop_header_branch
      %16 = sbr.rel (%p14) target = $region8
    $region5: #{_range_embed_out.1} parent=1 // loop_body
      %s18 = ssub.s32 %s13, 1
      %s19 = ssub.s32 %s13, 2
      %s20 = sadd.s32 %s13, 1
      %s21 = ssub.s32 %s13, %s20
      %p22 = scmp.eq.s32.totalorder %s21, 0
      %s24 = sadd.s32 %s23, 1
      %s25 = scalar_select %p22, %s23, %s24
      %p28 = pneg %p22
      %p29 = scmp.eq.s32.totalorder %s13, 1
      %p30 = por %p28, %p29
      %p31 = scmp.ne.s32.totalorder %s23, %s26
      %p32 = scmp.eq.s32.totalorder %s13, 0
      %p33 = por %p31, %p32
      %p34 = scmp.ne.s32.totalorder %s23, %s26
      %p35 = scmp.eq.s32.totalorder %s18, 1
      %p36 = por %p34, %p35
      %p37 = scmp.ne.s32.totalorder %s26, %s27
      %p38 = scmp.eq.s32.totalorder %s18, 0
      %p39 = por %p37, %p38
      %p40 = scmp.ne.s32.totalorder %s26, %s27
      %p41 = scmp.eq.s32.totalorder %s19, 1
      %p42 = por %p40, %p41
      %p44 = scmp.ne.s32.totalorder %s27, %s43
      %p45 = scmp.eq.s32.totalorder %s19, 0
      %p46 = por %p44, %p45
      %s48 = sadd.s32 %s47, 1
      %p51 = scmp.eq.s32.totalorder %s13, 1
      %p52 = scmp.ne.s32.totalorder %s47, %s49
      %p53 = scmp.eq.s32.totalorder %s13, 0
      %p54 = por %p52, %p53
      %p55 = scmp.ne.s32.totalorder %s47, %s49
      %p56 = scmp.eq.s32.totalorder %s18, 1
      %p57 = por %p55, %p56
      %p58 = scmp.ne.s32.totalorder %s49, %s50
      %p59 = scmp.eq.s32.totalorder %s18, 0
      %p60 = por %p58, %p59
      %p61 = scmp.ne.s32.totalorder %s49, %s50
      %p62 = scmp.eq.s32.totalorder %s19, 1
      %p63 = por %p61, %p62
      %p65 = scmp.ne.s32.totalorder %s50, %s64
      %p66 = scmp.eq.s32.totalorder %s19, 0
      %p67 = por %p65, %p66
      %s69 = sadd.s32 %s68, 1
      %p72 = scmp.eq.s32.totalorder %s13, 1
      %p73 = scmp.ne.s32.totalorder %s68, %s70
      %p74 = scmp.eq.s32.totalorder %s13, 0
      %p75 = por %p73, %p74
      %p76 = scmp.ne.s32.totalorder %s68, %s70
      %p77 = scmp.eq.s32.totalorder %s18, 1
      %p78 = por %p76, %p77
      %p79 = scmp.ne.s32.totalorder %s70, %s71
      %p80 = scmp.eq.s32.totalorder %s18, 0
      %p81 = por %p79, %p80
      %p82 = scmp.ne.s32.totalorder %s70, %s71
      %p83 = scmp.eq.s32.totalorder %s19, 1
      %p84 = por %p82, %p83
      %p86 = scmp.ne.s32.totalorder %s71, %s85
      %p87 = scmp.eq.s32.totalorder %s19, 0
      %p88 = por %p86, %p87
      %s90 = sadd.s32 %s89, 1
      %p93 = scmp.eq.s32.totalorder %s13, 1
      %p94 = scmp.ne.s32.totalorder %s89, %s91
      %p95 = scmp.eq.s32.totalorder %s13, 0
      %p96 = por %p94, %p95
      %p97 = scmp.ne.s32.totalorder %s89, %s91
      %p98 = scmp.eq.s32.totalorder %s18, 1
      %p99 = por %p97, %p98
      %p100 = scmp.ne.s32.totalorder %s91, %s92
      %p101 = scmp.eq.s32.totalorder %s18, 0
      %p102 = por %p100, %p101
      %p103 = scmp.ne.s32.totalorder %s91, %s92
      %p104 = scmp.eq.s32.totalorder %s19, 1
      %p105 = por %p103, %p104
      %p107 = scmp.ne.s32.totalorder %s92, %s106
      %p108 = scmp.eq.s32.totalorder %s19, 0
      %p109 = por %p107, %p108
      %s111 = sadd.s32 %s110, 1
      %p114 = scmp.eq.s32.totalorder %s13, 1
      %p115 = scmp.ne.s32.totalorder %s110, %s112
      %p116 = scmp.eq.s32.totalorder %s13, 0
      %p117 = por %p115, %p116
      %p118 = scmp.ne.s32.totalorder %s110, %s112
      %p119 = scmp.eq.s32.totalorder %s18, 1
      %p120 = por %p118, %p119
      %p121 = scmp.ne.s32.totalorder %s112, %s113
      %p122 = scmp.eq.s32.totalorder %s18, 0
      %p123 = por %p121, %p122
      %p124 = scmp.ne.s32.totalorder %s112, %s113
      %p125 = scmp.eq.s32.totalorder %s19, 1
      %p126 = por %p124, %p125
      %p128 = scmp.ne.s32.totalorder %s113, %s127
      %p129 = scmp.eq.s32.totalorder %s19, 0
      %p130 = por %p128, %p129
      %s132 = sadd.s32 %s131, 1
      %p135 = scmp.eq.s32.totalorder %s13, 1
      %p136 = scmp.ne.s32.totalorder %s131, %s133
      %p137 = scmp.eq.s32.totalorder %s13, 0
      %p138 = por %p136, %p137
      %p139 = scmp.ne.s32.totalorder %s131, %s133
      %p140 = scmp.eq.s32.totalorder %s18, 1
      %p141 = por %p139, %p140
      %p142 = scmp.ne.s32.totalorder %s133, %s134
      %p143 = scmp.eq.s32.totalorder %s18, 0
      %p144 = por %p142, %p143
      %p145 = scmp.ne.s32.totalorder %s133, %s134
      %p146 = scmp.eq.s32.totalorder %s19, 1
      %p147 = por %p145, %p146
      %p149 = scmp.ne.s32.totalorder %s134, %s148
      %p150 = scmp.eq.s32.totalorder %s19, 0
      %p151 = por %p149, %p150
      %s153 = sadd.s32 %s152, 1
      %p156 = scmp.eq.s32.totalorder %s13, 1
      %p157 = scmp.ne.s32.totalorder %s152, %s154
      %p158 = scmp.eq.s32.totalorder %s13, 0
      %p159 = por %p157, %p158
      %p160 = scmp.ne.s32.totalorder %s152, %s154
      %p161 = scmp.eq.s32.totalorder %s18, 1
      %p162 = por %p160, %p161
      %p163 = scmp.ne.s32.totalorder %s154, %s155
      %p164 = scmp.eq.s32.totalorder %s18, 0
      %p165 = por %p163, %p164
      %p166 = scmp.ne.s32.totalorder %s154, %s155
      %p167 = scmp.eq.s32.totalorder %s19, 1
      %p168 = por %p166, %p167
      %p170 = scmp.ne.s32.totalorder %s155, %s169
      %p171 = scmp.eq.s32.totalorder %s19, 0
      %p172 = por %p170, %p171
      %s173 = ssub.s32 %s13, %s20
      %p174 = scmp.eq.s32.totalorder %s173, 0
      %s176 = sadd.s32 %s175, 1
      %s177 = scalar_select %p174, %s175, %s176
      %p180 = pneg %p174
      %p181 = scmp.eq.s32.totalorder %s13, 1
      %p182 = por %p180, %p181
      %p183 = scmp.ne.s32.totalorder %s175, %s178
      %p184 = scmp.eq.s32.totalorder %s13, 0
      %p185 = por %p183, %p184
      %p186 = scmp.ne.s32.totalorder %s175, %s178
      %p187 = scmp.eq.s32.totalorder %s18, 1
      %p188 = por %p186, %p187
      %p189 = scmp.ne.s32.totalorder %s178, %s179
      %p190 = scmp.eq.s32.totalorder %s18, 0
      %p191 = por %p189, %p190
      %p192 = scmp.ne.s32.totalorder %s178, %s179
      %p193 = scmp.eq.s32.totalorder %s19, 1
      %p194 = por %p192, %p193
      %p196 = scmp.ne.s32.totalorder %s179, %s195
      %p197 = scmp.eq.s32.totalorder %s19, 0
      %p198 = por %p196, %p197
      %p199 = scmp.le.s32.totalorder 1, %s13
      %p200 = scmp.lt.s32.totalorder %s13, 3
      %p201 = pnand %p199, %p200
      %p202 = pneg %p201
      // Predicated region
      $region9: #{_range_embed_out.1} parent=5 // pred_check
        _
      $region10: #{_range_embed_out.1} parent=5 // pred_check_branch
        %204 = sbr.rel (%p201) target = $region12
      $region11: #{_range_embed_out.1} parent=5 // pred_region
        %s205 = ssub.s32 %s13, 1
        // Predicated region
        $region13: #{_range_embed_out.1} parent=11 // pred_check
          %p206 = pneg %p60
        $region14: #{_range_embed_out.1} parent=11 // pred_check_branch
          %208 = sbr.rel (%p206) target = $region16
        $region15: #{_range_embed_out.1} parent=11 // pred_region
          _
        $region16: #{_range_embed_out.1} parent=11 // pred_fallthru
          _
        // Predicated region
        $region17: #{_range_embed_out.1} parent=11 // pred_check
          %p209 = pneg %p81
        $region18: #{_range_embed_out.1} parent=11 // pred_check_branch
          %211 = sbr.rel (%p209) target = $region20
        $region19: #{_range_embed_out.1} parent=11 // pred_region
          _
        $region20: #{_range_embed_out.1} parent=11 // pred_fallthru
          _
        // Predicated region
        $region21: #{_range_embed_out.1} parent=11 // pred_check
          %p212 = pneg %p102
        $region22: #{_range_embed_out.1} parent=11 // pred_check_branch
          %214 = sbr.rel (%p212) target = $region24
        $region23: #{_range_embed_out.1} parent=11 // pred_region
          _
        $region24: #{_range_embed_out.1} parent=11 // pred_fallthru
          _
        // Predicated region
        $region25: #{_range_embed_out.1} parent=11 // pred_check
          %p215 = pneg %p123
        $region26: #{_range_embed_out.1} parent=11 // pred_check_branch
          %217 = sbr.rel (%p215) target = $region28
        $region27: #{_range_embed_out.1} parent=11 // pred_region
          _
        $region28: #{_range_embed_out.1} parent=11 // pred_fallthru
          _
        // Predicated region
        $region29: #{_range_embed_out.1} parent=11 // pred_check
          %p218 = pneg %p144
        $region30: #{_range_embed_out.1} parent=11 // pred_check_branch
          %220 = sbr.rel (%p218) target = $region32
        $region31: #{_range_embed_out.1} parent=11 // pred_region
          _
        $region32: #{_range_embed_out.1} parent=11 // pred_fallthru
          _
        // Predicated region
        $region33: #{_range_embed_out.1} parent=11 // pred_check
          %p221 = pneg %p165
        $region34: #{_range_embed_out.1} parent=11 // pred_check_branch
          %223 = sbr.rel (%p221) target = $region36
        $region35: #{_range_embed_out.1} parent=11 // pred_region
          _
        $region36: #{_range_embed_out.1} parent=11 // pred_fallthru
          _
      $region12: #{_range_embed_out.1} parent=5 // pred_fallthru
        _
      %p224 = scmp.lt.s32.totalorder %s13, 2
      // Predicated region
      $region37: #{_range_embed_out.1} parent=5 // pred_check
        %p225 = pneg %p224
      $region38: #{_range_embed_out.1} parent=5 // pred_check_branch
        %227 = sbr.rel (%p225) target = $region40
      $region39: #{_range_embed_out.1} parent=5 // pred_region
        // Predicated region
        $region41: #{_range_embed_out.1} parent=39 // pred_check
          %p228 = pneg %p33
        $region42: #{_range_embed_out.1} parent=39 // pred_check_branch
          %230 = sbr.rel (%p228) target = $region44
        $region43: #{_range_embed_out.1} parent=39 // pred_region
          %s231 = smul.u32 2, %s13
          %p232 = scmp.lt.s32.totalorder %s231, 3
          %s233 = scalar_select %p232, %s231, 3
          %s234 = scalar_lea.vmem %s0, %s233
          %s235 = smul.u32 2, %s13
        $region44: #{_range_embed_out.1} parent=39 // pred_fallthru
          _
      $region40: #{_range_embed_out.1} parent=5 // pred_fallthru
        _
      %p236 = scmp.le.s32.totalorder 1, %s13
      %p237 = scmp.lt.s32.totalorder %s13, 3
      %p238 = pnand %p236, %p237
      %p239 = pneg %p238
      // Predicated region
      $region45: #{_range_embed_out.1} parent=5 // pred_check
        _
      $region46: #{_range_embed_out.1} parent=5 // pred_check_branch
        %241 = sbr.rel (%p238) target = $region48
      $region47: #{_range_embed_out.1} parent=5 // pred_region
        %s242 = ssub.s32 %s13, 1
        %s243 = smul.u32 2, %s18
        %p244 = scmp.lt.s32.totalorder %s243, 3
        %s245 = scalar_select %p244, %s243, 3
        %s246 = scalar_lea.vmem %s0, %s245
        %p247 = pneg %p39
        %p248 = pneg %p36
        %p249 = pneg %p60
        %p250 = pneg %p57
        %p251 = pneg %p81
        %p252 = pneg %p78
        %p253 = pneg %p102
        %p254 = pneg %p99
        %p255 = pneg %p123
        %p256 = pneg %p120
        %p257 = pneg %p144
        %p258 = pneg %p141
        %p259 = pneg %p165
        %p260 = pneg %p162
        %p261 = pneg %p191
        %p262 = pneg %p188
        %s263 = sand.u32 %s178, 1
        %s264 = sand.u32 %s178, 1
        %s265 = smul.addr %s264, 32
        %s266 = scalar_lea.vmem [#allocation2], %s265
        %s267 = smul.u32 2, %s18
        %p268 = scmp.lt.s32.totalorder %s267, 3
        %s269 = scalar_select %p268, %s267, 3
        %s270 = scalar_lea.vmem %s0, %s269
        %s271 = smul.u32 2, %s18
        %s272 = smul.u32 2, %s18
        %v273 = vld [vmem:[%s270] sm:$0x3]
        %v274 = vld [vmem:[%s1] sm:$0xf]
        %v275 = vld [vmem:[%s2] sm:$0xf]
        %v276 = vld [vmem:[%s3] sm:$0xff]
        %v277 = vld [vmem:[%s4] sm:$0xff]
        %v278 = vld [vmem:[%s5] sm:$0xff]
        %v279 = vld [vmem:[%s5 + $0x8] sm:$0xff]
        %v280 = vld [vmem:[%s6] sm:$0xff]
        %v281 = vld [vmem:[%s6 + $0x8] sm:$0xff]
        %283 = vset.pattern.permute.xlu0 0
        %284 = vperm.xlu0 %283, %v274
        %v285 = vpop.permute.xlu0 %284
        %v288 = vlaneseq
        %v289 = vshrl.u32 %v288, 7
        %v290 = vsub.s32 0, %v289
        %v291 = vrot.slane %v273, %v290
        %v292 = vlaneseq
        %v293 = vshrl.u32 %v292, 7
        %v294 = vsub.s32 1, %v293
        %v295 = vrot.slane %v273, %v294
        %v298 = vmul.f32 %v285, %v291
        %v299 = vmul.f32 %v285, %v295
        %301 = vset.pattern.permute.xlu0 0
        %302 = vperm.xlu0 %301, %v275
        %v303 = vpop.permute.xlu0 %302
        %v305 = vadd.f32 %v303, %v298
        %v306 = vadd.f32 %v303, %v299
        %v307 = vmul.f32 %v305, 0.5
        %v308 = vmul.f32 %v306, 0.5
        %v309 = vmul.f32 %v305, 0.044715
        %v310 = vmul.f32 %v306, 0.044715
        %v311 = vmul.f32 %v309, %v305
        %v312 = vmul.f32 %v310, %v306
        %v313 = vmul.f32 %v311, %v305
        %v314 = vmul.f32 %v312, %v306
        %v315 = vadd.f32 %v305, %v313
        %v316 = vadd.f32 %v306, %v314
        %v317 = vmul.f32 %v315, 0.7978846
        %v318 = vmul.f32 %v316, 0.7978846
        %v319 = vtanh.pop %v317
        %v320 = vtanh.pop %v318
        %v321 = vadd.f32 %v319, 1.0
        %v322 = vadd.f32 %v320, 1.0
        %v323 = vmul.f32 %v307, %v321
        %v324 = vmul.f32 %v308, %v322
        %326 = vset.pattern.permute.xlu0 0
        %327 = vperm.xlu0 %326, %v276
        %v328 = vpop.permute.xlu0 %327
        %v330 = vlaneseq
        %v331 = vshrl.u32 %v330, 7
        %v332 = vsub.s32 0, %v331
        %v333 = vrot.slane %v323, %v332
        %v334 = vlaneseq
        %v335 = vshrl.u32 %v334, 7
        %v336 = vsub.s32 0, %v335
        %v337 = vrot.slane %v324, %v336
        %v338 = vmul.f32 %v328, %v333
        %v339 = vmul.f32 %v328, %v337
        %341 = vset.pattern.permute.xlu0 0
        %342 = vperm.xlu0 %341, %v277
        %v343 = vpop.permute.xlu0 %342
        %v345 = vadd.f32 %v343, %v338
        %v346 = vadd.f32 %v343, %v339
        %347 = vset.pattern.permute.xlu0 1
        %348 = vperm.xlu0 %347, %v276
        %v349 = vpop.permute.xlu0 %348
        %v351 = vlaneseq
        %v352 = vshrl.u32 %v351, 7
        %v353 = vsub.s32 1, %v352
        %v354 = vrot.slane %v323, %v353
        %v355 = vlaneseq
        %v356 = vshrl.u32 %v355, 7
        %v357 = vsub.s32 1, %v356
        %v358 = vrot.slane %v324, %v357
        %v359 = vmul.f32 %v349, %v354
        %v360 = vmul.f32 %v349, %v358
        %v361 = vadd.f32 %v345, %v359
        %v362 = vadd.f32 %v346, %v360
        %363 = vset.pattern.permute.xlu0 2
        %364 = vperm.xlu0 %363, %v276
        %v365 = vpop.permute.xlu0 %364
        %v367 = vlaneseq
        %v368 = vshrl.u32 %v367, 7
        %v369 = vsub.s32 2, %v368
        %v370 = vrot.slane %v323, %v369
        %v371 = vlaneseq
        %v372 = vshrl.u32 %v371, 7
        %v373 = vsub.s32 2, %v372
        %v374 = vrot.slane %v324, %v373
        %v375 = vmul.f32 %v365, %v370
        %v376 = vmul.f32 %v365, %v374
        %v377 = vadd.f32 %v361, %v375
        %v378 = vadd.f32 %v362, %v376
        %379 = vset.pattern.permute.xlu0 3
        %380 = vperm.xlu0 %379, %v276
        %v381 = vpop.permute.xlu0 %380
        %v383 = vlaneseq
        %v384 = vshrl.u32 %v383, 7
        %v385 = vsub.s32 3, %v384
        %v386 = vrot.slane %v323, %v385
        %v387 = vlaneseq
        %v388 = vshrl.u32 %v387, 7
        %v389 = vsub.s32 3, %v388
        %v390 = vrot.slane %v324, %v389
        %v391 = vmul.f32 %v381, %v386
        %v392 = vmul.f32 %v381, %v390
        %v393 = vadd.f32 %v377, %v391
        %v394 = vadd.f32 %v378, %v392
        %v395 = vmul.f32 %v393, 0.5
        %v396 = vmul.f32 %v394, 0.5
        %v397 = vmul.f32 %v393, 0.044715
        %v398 = vmul.f32 %v394, 0.044715
        %v399 = vmul.f32 %v397, %v393
        %v400 = vmul.f32 %v398, %v394
        %v401 = vmul.f32 %v399, %v393
        %v402 = vmul.f32 %v400, %v394
        %v403 = vadd.f32 %v393, %v401
        %v404 = vadd.f32 %v394, %v402
        %v405 = vmul.f32 %v403, 0.7978846
        %v406 = vmul.f32 %v404, 0.7978846
        %v407 = vtanh.pop %v405
        %v408 = vtanh.pop %v406
        %v409 = vadd.f32 %v407, 1.0
        %v410 = vadd.f32 %v408, 1.0
        %v411 = vmul.f32 %v395, %v409
        %v412 = vmul.f32 %v396, %v410
        %414 = vset.pattern.permute.xlu0 0
        %415 = vperm.xlu0 %414, %v278
        %v416 = vpop.permute.xlu0 %415
        %419 = vset.pattern.permute.xlu0 0
        %420 = vperm.xlu0 %419, %v279
        %v421 = vpop.permute.xlu0 %420
        %v423 = vlaneseq
        %v424 = vshrl.u32 %v423, 7
        %v425 = vsub.s32 0, %v424
        %v426 = vrot.slane %v411, %v425
        %v427 = vlaneseq
        %v428 = vshrl.u32 %v427, 7
        %v429 = vsub.s32 0, %v428
        %v430 = vrot.slane %v412, %v429
        %v431 = vmul.f32 %v416, %v426
        %v432 = vmul.f32 %v416, %v430
        %v433 = vmul.f32 %v421, %v426
        %v434 = vmul.f32 %v421, %v430
        %436 = vset.pattern.permute.xlu0 0
        %437 = vperm.xlu0 %436, %v280
        %v438 = vpop.permute.xlu0 %437
        %441 = vset.pattern.permute.xlu0 0
        %442 = vperm.xlu0 %441, %v281
        %v443 = vpop.permute.xlu0 %442
        %v445 = vadd.f32 %v438, %v431
        %v446 = vadd.f32 %v438, %v432
        %v447 = vadd.f32 %v443, %v433
        %v448 = vadd.f32 %v443, %v434
        %449 = vset.pattern.permute.xlu0 1
        %450 = vperm.xlu0 %449, %v278
        %v451 = vpop.permute.xlu0 %450
        %453 = vset.pattern.permute.xlu0 1
        %454 = vperm.xlu0 %453, %v279
        %v455 = vpop.permute.xlu0 %454
        %v457 = vlaneseq
        %v458 = vshrl.u32 %v457, 7
        %v459 = vsub.s32 1, %v458
        %v460 = vrot.slane %v411, %v459
        %v461 = vlaneseq
        %v462 = vshrl.u32 %v461, 7
        %v463 = vsub.s32 1, %v462
        %v464 = vrot.slane %v412, %v463
        %v465 = vmul.f32 %v451, %v460
        %v466 = vmul.f32 %v451, %v464
        %v467 = vmul.f32 %v455, %v460
        %v468 = vmul.f32 %v455, %v464
        %v469 = vadd.f32 %v445, %v465
        %v470 = vadd.f32 %v446, %v466
        %v471 = vadd.f32 %v447, %v467
        %v472 = vadd.f32 %v448, %v468
        %473 = vset.pattern.permute.xlu0 2
        %474 = vperm.xlu0 %473, %v278
        %v475 = vpop.permute.xlu0 %474
        %477 = vset.pattern.permute.xlu0 2
        %478 = vperm.xlu0 %477, %v279
        %v479 = vpop.permute.xlu0 %478
        %v481 = vlaneseq
        %v482 = vshrl.u32 %v481, 7
        %v483 = vsub.s32 2, %v482
        %v484 = vrot.slane %v411, %v483
        %v485 = vlaneseq
        %v486 = vshrl.u32 %v485, 7
        %v487 = vsub.s32 2, %v486
        %v488 = vrot.slane %v412, %v487
        %v489 = vmul.f32 %v475, %v484
        %v490 = vmul.f32 %v475, %v488
        %v491 = vmul.f32 %v479, %v484
        %v492 = vmul.f32 %v479, %v488
        %v493 = vadd.f32 %v469, %v489
        %v494 = vadd.f32 %v470, %v490
        %v495 = vadd.f32 %v471, %v491
        %v496 = vadd.f32 %v472, %v492
        %497 = vset.pattern.permute.xlu0 3
        %498 = vperm.xlu0 %497, %v278
        %v499 = vpop.permute.xlu0 %498
        %501 = vset.pattern.permute.xlu0 3
        %502 = vperm.xlu0 %501, %v279
        %v503 = vpop.permute.xlu0 %502
        %v505 = vlaneseq
        %v506 = vshrl.u32 %v505, 7
        %v507 = vsub.s32 3, %v506
        %v508 = vrot.slane %v411, %v507
        %v509 = vlaneseq
        %v510 = vshrl.u32 %v509, 7
        %v511 = vsub.s32 3, %v510
        %v512 = vrot.slane %v412, %v511
        %v513 = vmul.f32 %v499, %v508
        %v514 = vmul.f32 %v499, %v512
        %v515 = vmul.f32 %v503, %v508
        %v516 = vmul.f32 %v503, %v512
        %v517 = vadd.f32 %v493, %v513
        %v518 = vadd.f32 %v494, %v514
        %v519 = vadd.f32 %v495, %v515
        %v520 = vadd.f32 %v496, %v516
        %521 = vset.pattern.permute.xlu0 4
        %522 = vperm.xlu0 %521, %v278
        %v523 = vpop.permute.xlu0 %522
        %525 = vset.pattern.permute.xlu0 4
        %526 = vperm.xlu0 %525, %v279
        %v527 = vpop.permute.xlu0 %526
        %v529 = vlaneseq
        %v530 = vshrl.u32 %v529, 7
        %v531 = vsub.s32 4, %v530
        %v532 = vrot.slane %v411, %v531
        %v533 = vlaneseq
        %v534 = vshrl.u32 %v533, 7
        %v535 = vsub.s32 4, %v534
        %v536 = vrot.slane %v412, %v535
        %v537 = vmul.f32 %v523, %v532
        %v538 = vmul.f32 %v523, %v536
        %v539 = vmul.f32 %v527, %v532
        %v540 = vmul.f32 %v527, %v536
        %v541 = vadd.f32 %v517, %v537
        %v542 = vadd.f32 %v518, %v538
        %v543 = vadd.f32 %v519, %v539
        %v544 = vadd.f32 %v520, %v540
        %545 = vset.pattern.permute.xlu0 5
        %546 = vperm.xlu0 %545, %v278
        %v547 = vpop.permute.xlu0 %546
        %549 = vset.pattern.permute.xlu0 5
        %550 = vperm.xlu0 %549, %v279
        %v551 = vpop.permute.xlu0 %550
        %v553 = vlaneseq
        %v554 = vshrl.u32 %v553, 7
        %v555 = vsub.s32 5, %v554
        %v556 = vrot.slane %v411, %v555
        %v557 = vlaneseq
        %v558 = vshrl.u32 %v557, 7
        %v559 = vsub.s32 5, %v558
        %v560 = vrot.slane %v412, %v559
        %v561 = vmul.f32 %v547, %v556
        %v562 = vmul.f32 %v547, %v560
        %v563 = vmul.f32 %v551, %v556
        %v564 = vmul.f32 %v551, %v560
        %v565 = vadd.f32 %v541, %v561
        %v566 = vadd.f32 %v542, %v562
        %v567 = vadd.f32 %v543, %v563
        %v568 = vadd.f32 %v544, %v564
        %569 = vset.pattern.permute.xlu0 6
        %570 = vperm.xlu0 %569, %v278
        %v571 = vpop.permute.xlu0 %570
        %573 = vset.pattern.permute.xlu0 6
        %574 = vperm.xlu0 %573, %v279
        %v575 = vpop.permute.xlu0 %574
        %v577 = vlaneseq
        %v578 = vshrl.u32 %v577, 7
        %v579 = vsub.s32 6, %v578
        %v580 = vrot.slane %v411, %v579
        %v581 = vlaneseq
        %v582 = vshrl.u32 %v581, 7
        %v583 = vsub.s32 6, %v582
        %v584 = vrot.slane %v412, %v583
        %v585 = vmul.f32 %v571, %v580
        %v586 = vmul.f32 %v571, %v584
        %v587 = vmul.f32 %v575, %v580
        %v588 = vmul.f32 %v575, %v584
        %v589 = vadd.f32 %v565, %v585
        %v590 = vadd.f32 %v566, %v586
        %v591 = vadd.f32 %v567, %v587
        %v592 = vadd.f32 %v568, %v588
        %593 = vset.pattern.permute.xlu0 7
        %594 = vperm.xlu0 %593, %v278
        %v595 = vpop.permute.xlu0 %594
        %597 = vset.pattern.permute.xlu0 7
        %598 = vperm.xlu0 %597, %v279
        %v599 = vpop.permute.xlu0 %598
        %v601 = vlaneseq
        %v602 = vshrl.u32 %v601, 7
        %v603 = vsub.s32 7, %v602
        %v604 = vrot.slane %v411, %v603
        %v605 = vlaneseq
        %v606 = vshrl.u32 %v605, 7
        %v607 = vsub.s32 7, %v606
        %v608 = vrot.slane %v412, %v607
        %v609 = vmul.f32 %v595, %v604
        %v610 = vmul.f32 %v595, %v608
        %v611 = vmul.f32 %v599, %v604
        %v612 = vmul.f32 %v599, %v608
        %v613 = vadd.f32 %v589, %v609
        %v614 = vadd.f32 %v590, %v610
        %v615 = vadd.f32 %v591, %v611
        %v616 = vadd.f32 %v592, %v612
        %v617 = vmul.f32 %v613, 0.5
        %v618 = vmul.f32 %v614, 0.5
        %v619 = vmul.f32 %v615, 0.5
        %v620 = vmul.f32 %v616, 0.5
        %v621 = vmul.f32 %v613, 0.044715
        %v622 = vmul.f32 %v614, 0.044715
        %v623 = vmul.f32 %v615, 0.044715
        %v624 = vmul.f32 %v616, 0.044715
        %v625 = vmul.f32 %v621, %v613
        %v626 = vmul.f32 %v622, %v614
        %v627 = vmul.f32 %v623, %v615
        %v628 = vmul.f32 %v624, %v616
        %v629 = vmul.f32 %v625, %v613
        %v630 = vmul.f32 %v626, %v614
        %v631 = vmul.f32 %v627, %v615
        %v632 = vmul.f32 %v628, %v616
        %v633 = vadd.f32 %v613, %v629
        %v634 = vadd.f32 %v614, %v630
        %v635 = vadd.f32 %v615, %v631
        %v636 = vadd.f32 %v616, %v632
        %v637 = vmul.f32 %v633, 0.7978846
        %v638 = vmul.f32 %v634, 0.7978846
        %v639 = vmul.f32 %v635, 0.7978846
        %v640 = vmul.f32 %v636, 0.7978846
        %v641 = vtanh.pop %v637
        %v642 = vtanh.pop %v638
        %v643 = vtanh.pop %v639
        %v644 = vtanh.pop %v640
        %v645 = vadd.f32 %v641, 1.0
        %v646 = vadd.f32 %v642, 1.0
        %v647 = vadd.f32 %v643, 1.0
        %v648 = vadd.f32 %v644, 1.0
        %v649 = vmul.f32 %v617, %v645
        %v650 = vmul.f32 %v618, %v646
        %v651 = vmul.f32 %v619, %v647
        %v652 = vmul.f32 %v620, %v648
        %653 = vst [vmem:[%s266] sm:$0xff] %v649
        %654 = vst [vmem:[%s266 + $0x8] sm:$0xff] %v650
        %655 = vst [vmem:[%s266 + $0x10] sm:$0xff] %v651
        %656 = vst [vmem:[%s266 + $0x18] sm:$0xff] %v652
        %s657 = sand.u32 %s178, 1
        %s658 = sand.u32 %s178, 1
        %s659 = smul.addr %s658, 32
        %s660 = scalar_lea.vmem [#allocation2], %s659
        // Predicated region
        $region49: #{_range_embed_out.1} parent=47 // pred_check
          %p661 = pneg %p188
        $region50: #{_range_embed_out.1} parent=47 // pred_check_branch
          %663 = sbr.rel (%p661) target = $region52
        $region51: #{_range_embed_out.1} parent=47 // pred_region
          %s664 = smul.u32 2, %s18
          %s665 = smul.addr %s664, 8
          %s666 = scalar_lea.vmem %s7, %s665
          // Predicated region
          $region53: #{_range_embed_out.1} parent=51 // pred_check
            _
          $region54: #{_range_embed_out.1} parent=51 // pred_check_branch
            %668 = sbr.rel (0) target = $region56
          $region55: #{_range_embed_out.1} parent=51 // pred_region
            // Predicated region
            $region57: #{_range_embed_out.1} parent=55 // pred_check
              _
            $region58: #{_range_embed_out.1} parent=55 // pred_check_branch
              %670 = sbr.rel (0) target = $region60
            $region59: #{_range_embed_out.1} parent=55 // pred_region
              loop: start=0, step=1, limit=1
              $region61: #{_range_embed_out.1} parent=59 // loop_pre_header
                _
              $region62: #{_range_embed_out.1} parent=59 // loop_header
                %s672 = sphi 0, %s676
                %p673 = scmp.ge.s32.totalorder %s672, 1
                %s677 = sphi %s660, %s660
                %s678 = sphi %s666, %s666
              $region63: #{_range_embed_out.1} parent=59 // loop_header_branch
                %675 = sbr.rel (%p673) target = $region67
              $region64: #{_range_embed_out.1} parent=59 // loop_body
                %v679 = vld [vmem:[%s677] sm:$0xff]
                %680 = vst [vmem:[%s678] sm:$0xff] %v679
                %v681 = vld [vmem:[%s677 + $0x8] sm:$0xff]
                %682 = vst [vmem:[%s678 + $0x8] sm:$0xff] %v681
                %v683 = vld [vmem:[%s677 + $0x10] sm:$0xff]
                %684 = vst [vmem:[%s678 + $0x20] sm:$0xff] %v683
                %v685 = vld [vmem:[%s677 + $0x18] sm:$0xff]
                %686 = vst [vmem:[%s678 + $0x28] sm:$0xff] %v685
              $region65: #{_range_embed_out.1} parent=59 // loop_footer
                %s676 = sadd.s32 1, %s672
              $region66: #{_range_embed_out.1} parent=59 // loop_footer_branch
                %671 = sbr.rel target = $region62
              $region67: #{_range_embed_out.1} parent=59 // loop_exit
                _
            $region60: #{_range_embed_out.1} parent=55 // pred_fallthru
              _
            // Predicated region
            $region68: #{_range_embed_out.1} parent=55 // pred_check
              _
            $region69: #{_range_embed_out.1} parent=55 // pred_check_branch
              %688 = sbr.rel target = $region71
            $region70: #{_range_embed_out.1} parent=55 // pred_region
              _
            $region71: #{_range_embed_out.1} parent=55 // pred_fallthru
              _
          $region56: #{_range_embed_out.1} parent=51 // pred_fallthru
            _
          %689 = vnop
        $region52: #{_range_embed_out.1} parent=47 // pred_fallthru
          _
      $region48: #{_range_embed_out.1} parent=5 // pred_fallthru
        _
      %p690 = scmp.le.s32.totalorder 2, %s13
      // Predicated region
      $region72: #{_range_embed_out.1} parent=5 // pred_check
        %p691 = pneg %p690
      $region73: #{_range_embed_out.1} parent=5 // pred_check_branch
        %693 = sbr.rel (%p691) target = $region75
      $region74: #{_range_embed_out.1} parent=5 // pred_region
        %s694 = ssub.s32 %s13, 2
        // Predicated region
        $region76: #{_range_embed_out.1} parent=74 // pred_check
          %p695 = pneg %p194
        $region77: #{_range_embed_out.1} parent=74 // pred_check_branch
          %697 = sbr.rel (%p695) target = $region79
        $region78: #{_range_embed_out.1} parent=74 // pred_region
          %s698 = sand.u32 %s179, 1
          %s699 = sand.u32 %s179, 1
          %s700 = smul.addr %s699, 32
          %s701 = scalar_lea.vmem [#allocation2], %s700
        $region79: #{_range_embed_out.1} parent=74 // pred_fallthru
          _
      $region75: #{_range_embed_out.1} parent=5 // pred_fallthru
        _
    $region6: #{_range_embed_out.1} parent=1 // loop_footer
      %s17 = sadd.s32 1, %s13
    $region7: #{_range_embed_out.1} parent=1 // loop_footer_branch
      %12 = sbr.rel target = $region3
    $region8: #{_range_embed_out.1} parent=1 // loop_exit
      _

</llo_original>
